<compile_context>
chip_gen: v5e
topology: v5e:2x2
jax: 0.10.0
libtpu: 0.0.40
codegen_flags: <defaults>
</compile_context>

<pallas_src>
import functools

import jax
import jax.numpy as jnp
import numpy as np
from jax.experimental import pallas as pl
from jax.experimental.pallas import tpu as pltpu


def _round_up(x, m):
    return (x + m - 1) // m * m


def _vmem_bytes(shape, dtype):
    """Approximate VMEM footprint: last dim padded to 128 lanes, 2nd-to-last to the
    dtype's sublane granule (8 for 4B, 16 for 2B, 32 for 1B)."""
    itemsize = jnp.dtype(dtype).itemsize
    sub = max(8, 32 // itemsize)
    dims = [1, 1] + list(shape)
    dims[-1] = _round_up(dims[-1], 128)
    dims[-2] = _round_up(dims[-2], sub)
    n = itemsize
    for d in dims:
        n *= d
    return n


def _downsample_conv_kernel(x_ref, w_ref, b_ref, o_ref, *, ht, wo):
    """One (batch, row-tile) grid step of the 3x3 / stride-2 / pad-1 conv.

    x_ref: (2, 2, (ht+2)*(wo+1), Cin)  parity-split, row-flattened input window
           [row-parity, col-parity, pair-row * pair-col (flattened), Cin]
    w_ref: (9, Cin, Cout)              tap k = kh*3 + kw   (resident across the grid)
    b_ref: (1, Cout)                   f32 bias
    o_ref: (ht, wo, Cout)              output row-tile (exact, no channel padding)
    """
    wp = wo + 1                # pair-columns per flattened row (incl. 1 overrun col)
    n_rows = ht * wp
    cout = o_ref.shape[-1]

    acc = jnp.zeros((n_rows, cout), jnp.float32)
    for kh in range(3):
        pr, r0 = kh % 2, kh // 2
        for kw in range(3):
            pc, c0 = kw % 2, kw // 2
            start = r0 * wp + c0
            # Contiguous 2-D slab: rows (i*wp + j) hold input pixel for output (i, j).
            lhs = x_ref[pr, pc, start:start + n_rows, :]          # (n_rows, Cin)
            acc = acc + jnp.dot(lhs, w_ref[kh * 3 + kw],
                                preferred_element_type=jnp.float32)

    res = (acc + b_ref[...]).astype(o_ref.dtype)
    # Drop the one overrun column per output row while storing (exactly Wo*Cout bytes
    # per row go to HBM; no post-kernel slice pass needed).
    for i in range(ht):
        o_ref[i, :, :] = res[i * wp:i * wp + wo, :]


def downsample_nhwc(x, weight, bias, *, compute_dtype=None):
    """Conv2d(dim, dim, 3, stride=2, padding=1) on NHWC input via a Pallas kernel.

    x: (N, H, W, C), weight: (C, C, 3, 3) PyTorch OIHW, bias: (C,)
    returns (N, Ho, Wo, C).  MXU inputs default to bf16 (f32 accumulation)."""
    N, H, W, C = x.shape
    Cout, Cin, KH, KW = weight.shape
    assert (Cin, KH, KW) == (C, 3, 3) and Cout == C, "Downsample expects dim->dim 3x3"
    Ho = (H - 1) // 2 + 1
    Wo = (W - 1) // 2 + 1
    WP = Wo + 1                             # column pairs (incl. left pad column pair)

    out_dtype = x.dtype
    if compute_dtype is None:
        compute_dtype = jnp.bfloat16 if out_dtype == jnp.float32 else out_dtype

    # ---- VMEM budget & row-tile plan --------------------------------------------
    try:
        vmem_cap = int(pltpu.get_tpu_info().vmem_capacity_bytes)
    except Exception:
        vmem_cap = 64 * 1024 * 1024         # assume the smallest (v7x per-TC) VMEM
    vmem_limit = min(vmem_cap * 3 // 4, 100 * 1024 * 1024)
    budget = int(vmem_limit * 0.85)

    def fits(ht):
        n_rows = ht * WP
        x_blk = _vmem_bytes((2, 2, (ht + 2) * WP, C), compute_dtype)
        o_blk = _vmem_bytes((ht, Wo, Cout), out_dtype)
        w_blk = _vmem_bytes((9, C, Cout), compute_dtype)
        b_blk = _vmem_bytes((1, Cout), jnp.float32)
        acc_b = _vmem_bytes((n_rows, Cout), jnp.float32)      # f32 accumulator value
        lhs_b = _vmem_bytes((n_rows, C), compute_dtype)       # one tap value
        return 2 * (x_blk + o_blk + w_blk + b_blk) + acc_b + 2 * lhs_b <= budget

    HT_CAP = 64     # bounds the unrolled store loop and the accumulator size
    ht = 1
    for cand in sorted((d for d in range(1, Ho + 1) if Ho % d == 0), reverse=True):
        if cand <= HT_CAP and fits(cand):
            ht = cand
            break
    T = Ho // ht
    # v7x has 2 TensorCores per chip: make sure there are >= 2 parallel grid steps.
    if N * T < 2 and Ho >= 2 and Ho % 2 == 0:
        ht = Ho // 2
        T = 2
    # TODO(synk): add a width (Wo) tiling grid axis for the huge-W case where even
    # ht=1 would not fit the VMEM budget.

    # ---- glue: pad + cast + even/odd parity split (the only HBM prep pass) -------
    HPa = T * ht + 2                        # row pairs incl. 1 halo pair + 1 overrun pair
    rows, cols = 2 * HPa, 2 * WP
    xp = jnp.pad(x.astype(compute_dtype),
                 ((0, 0), (1, rows - H - 1), (1, cols - W - 1), (0, 0)))
    # (N, rows, cols, C) -> (N, row-parity, col-parity, row-pair, col-pair, C)
    xq = xp.reshape(N, HPa, 2, WP, 2, C).transpose(0, 2, 4, 1, 3, 5)
    # Overlapping row-tile windows (1 duplicated row-pair per tile), then flatten
    # (row-pair, col-pair) so every conv tap becomes a contiguous 2-D slab in-kernel.
    xt = jnp.stack([xq[:, :, :, t * ht:t * ht + ht + 2] for t in range(T)], axis=1)
    xt = xt.reshape(N, T, 2, 2, (ht + 2) * WP, C)

    # PyTorch OIHW (Cout, Cin, 3, 3) -> (kh, kw, cin, cout) -> (9, Cin, Cout)
    w9 = jnp.transpose(weight, (2, 3, 1, 0)).reshape(9, C, Cout).astype(compute_dtype)
    b2 = bias.astype(jnp.float32).reshape(1, Cout)

    kernel = functools.partial(_downsample_conv_kernel, ht=ht, wo=Wo)
    out = pl.pallas_call(
        kernel,
        out_shape=jax.ShapeDtypeStruct((N, T, ht, Wo, Cout), out_dtype),
        grid_spec=pltpu.PrefetchScalarGridSpec(
            num_scalar_prefetch=0,
            grid=(N, T),
            in_specs=[
                pl.BlockSpec((None, None, 2, 2, (ht + 2) * WP, C),
                             lambda n, t: (n, t, 0, 0, 0, 0)),
                pl.BlockSpec((9, C, Cout), lambda n, t: (0, 0, 0)),
                pl.BlockSpec((1, Cout), lambda n, t: (0, 0)),
            ],
            out_specs=pl.BlockSpec((None, None, ht, Wo, Cout),
                                   lambda n, t: (n, t, 0, 0, 0)),
        ),
        compiler_params=pltpu.CompilerParams(
            dimension_semantics=("parallel", "parallel"),
            vmem_limit_bytes=int(vmem_limit)),
    )(xt, w9, b2)

    out = out.reshape(N, T * ht, Wo, Cout)
    if T * ht != Ho:          # only possible if the divisor-based plan is ever bypassed
        out = out[:, :Ho]
    return out


def downsample(x_nchw, weight, bias, *, compute_dtype=None):
    """PyTorch-layout (NCHW) wrapper.  Prefer downsample_nhwc inside NHWC pipelines so
    the two transposes below can be dropped/fused away."""
    x_nhwc = jnp.transpose(x_nchw, (0, 2, 3, 1))
    y = downsample_nhwc(x_nhwc, weight, bias, compute_dtype=compute_dtype)
    return jnp.transpose(y, (0, 3, 1, 2))


if __name__ == "__main__":
    # Deterministic synthetic setup: dim=4, input (N=2, C=4, H=16, W=16)
    key = jax.random.PRNGKey(0)
    k_x, k_w, k_b = jax.random.split(key, 3)

    N, C, H, W = 2, 4, 16, 16
    x = jax.random.normal(k_x, (N, C, H, W), dtype=jnp.float32)

    # Deterministic Conv2d-style init (uniform in +-1/sqrt(fan_in), fan_in = C*3*3)
    fan_in = C * 3 * 3
    bound = 1.0 / np.sqrt(fan_in)
    weight = jax.random.uniform(k_w, (C, C, 3, 3), jnp.float32, -bound, bound)
    bias = jax.random.uniform(k_b, (C,), jnp.float32, -bound, bound)

    out = downsample(x, weight, bias)
    out = jax.block_until_ready(out)

    # Reference: XLA conv with the same semantics as the PyTorch module.
    ref = jax.lax.conv_general_dilated(
        x, weight, window_strides=(2, 2), padding=((1, 1), (1, 1)),
        dimension_numbers=("NCHW", "OIHW", "NCHW")) + bias.reshape(1, C, 1, 1)

    assert out.shape == (N, C, H // 2, W // 2), out.shape
    # Default path uses bf16 MXU inputs with f32 accumulation; tolerance covers the
    # bf16 input/weight rounding (pass compute_dtype=jnp.float32 for near-exact).
    np.testing.assert_allclose(np.asarray(out), np.asarray(ref), rtol=2e-2, atol=2e-2)

    print("KERNEL_OK")
</pallas_src>

<mosaic_0001>
module attributes {stable_mosaic.version = 11 : i64} {
  func.func @_downsample_conv_kernel(%arg0: i32, %arg1: i32, %arg2: memref<1x1x2x2x90x4xbf16, #tpu.memory_space<vmem>>, %arg3: memref<9x4x4xbf16, #tpu.memory_space<vmem>>, %arg4: memref<1x4xf32, #tpu.memory_space<vmem>>, %arg5: memref<1x1x8x8x4xf32, #tpu.memory_space<vmem>>) attributes {dimension_semantics = [#tpu.dimension_semantics<parallel>, #tpu.dimension_semantics<parallel>], iteration_bounds = array<i64: 2, 1>, scalar_prefetch = 0 : i64, scratch_operands = 0 : i64, tpu.core_type = #tpu.core_type<tc>, window_params = [{transform_indices = @transform_0, window_bounds = array<i64: 1, 1, 2, 2, 90, 4>}, {pipeline_mode = #tpu.pipeline_mode<synchronous>, transform_indices = @transform_1, window_bounds = array<i64: 9, 4, 4>}, {pipeline_mode = #tpu.pipeline_mode<synchronous>, transform_indices = @transform_2, window_bounds = array<i64: 1, 4>}, {transform_indices = @transform_3, window_bounds = array<i64: 1, 1, 8, 8, 4>}]} {
    %cst = arith.constant 0.000000e+00 : f32
    %0 = vector.broadcast %cst : f32 to vector<72x4xf32>
    %c0 = arith.constant 0 : index
    %c0_0 = arith.constant 0 : index
    %c0_1 = arith.constant 0 : index
    %c0_2 = arith.constant 0 : index
    %c0_3 = arith.constant 0 : index
    %c0_4 = arith.constant 0 : index
    %1 = vector.load %arg2[%c0, %c0_0, %c0_1, %c0_2, %c0_3, %c0_4] : memref<1x1x2x2x90x4xbf16, #tpu.memory_space<vmem>>, vector<1x1x1x1x72x4xbf16>
    %2 = vector.shape_cast %1 : vector<1x1x1x1x72x4xbf16> to vector<72x4xbf16>
    %c0_5 = arith.constant 0 : index
    %c0_6 = arith.constant 0 : index
    %c0_7 = arith.constant 0 : index
    %3 = vector.load %arg3[%c0_5, %c0_6, %c0_7] : memref<9x4x4xbf16, #tpu.memory_space<vmem>>, vector<1x4x4xbf16>
    %4 = vector.shape_cast %3 : vector<1x4x4xbf16> to vector<4x4xbf16>
    %cst_8 = arith.constant dense<0.000000e+00> : vector<72x4xf32>
    %5 = tpu.matmul %2, %4, %cst_8 {dimension_numbers = #tpu.dot_dimension_numbers<[1], [0], [0], [1], [0, 0, 1, 1], [], []>} : vector<72x4xbf16>, vector<4x4xbf16>, vector<72x4xf32> -> vector<72x4xf32>
    %6 = arith.addf %0, %5 : vector<72x4xf32>
    %c0_9 = arith.constant 0 : index
    %c0_10 = arith.constant 0 : index
    %c0_11 = arith.constant 0 : index
    %c1 = arith.constant 1 : index
    %c0_12 = arith.constant 0 : index
    %c0_13 = arith.constant 0 : index
    %7 = vector.load %arg2[%c0_9, %c0_10, %c0_11, %c1, %c0_12, %c0_13] : memref<1x1x2x2x90x4xbf16, #tpu.memory_space<vmem>>, vector<1x1x1x1x72x4xbf16>
    %8 = vector.shape_cast %7 : vector<1x1x1x1x72x4xbf16> to vector<72x4xbf16>
    %c1_14 = arith.constant 1 : index
    %c0_15 = arith.constant 0 : index
    %c0_16 = arith.constant 0 : index
    %9 = vector.load %arg3[%c1_14, %c0_15, %c0_16] : memref<9x4x4xbf16, #tpu.memory_space<vmem>>, vector<1x4x4xbf16>
    %10 = vector.shape_cast %9 : vector<1x4x4xbf16> to vector<4x4xbf16>
    %cst_17 = arith.constant dense<0.000000e+00> : vector<72x4xf32>
    %11 = tpu.matmul %8, %10, %cst_17 {dimension_numbers = #tpu.dot_dimension_numbers<[1], [0], [0], [1], [0, 0, 1, 1], [], []>} : vector<72x4xbf16>, vector<4x4xbf16>, vector<72x4xf32> -> vector<72x4xf32>
    %12 = arith.addf %6, %11 : vector<72x4xf32>
    %c0_18 = arith.constant 0 : index
    %c0_19 = arith.constant 0 : index
    %c0_20 = arith.constant 0 : index
    %c0_21 = arith.constant 0 : index
    %c1_22 = arith.constant 1 : index
    %c0_23 = arith.constant 0 : index
    %13 = vector.load %arg2[%c0_18, %c0_19, %c0_20, %c0_21, %c1_22, %c0_23] : memref<1x1x2x2x90x4xbf16, #tpu.memory_space<vmem>>, vector<1x1x1x1x72x4xbf16>
    %14 = vector.shape_cast %13 : vector<1x1x1x1x72x4xbf16> to vector<72x4xbf16>
    %c2 = arith.constant 2 : index
    %c0_24 = arith.constant 0 : index
    %c0_25 = arith.constant 0 : index
    %15 = vector.load %arg3[%c2, %c0_24, %c0_25] : memref<9x4x4xbf16, #tpu.memory_space<vmem>>, vector<1x4x4xbf16>
    %16 = vector.shape_cast %15 : vector<1x4x4xbf16> to vector<4x4xbf16>
    %cst_26 = arith.constant dense<0.000000e+00> : vector<72x4xf32>
    %17 = tpu.matmul %14, %16, %cst_26 {dimension_numbers = #tpu.dot_dimension_numbers<[1], [0], [0], [1], [0, 0, 1, 1], [], []>} : vector<72x4xbf16>, vector<4x4xbf16>, vector<72x4xf32> -> vector<72x4xf32>
    %18 = arith.addf %12, %17 : vector<72x4xf32>
    %c0_27 = arith.constant 0 : index
    %c0_28 = arith.constant 0 : index
    %c1_29 = arith.constant 1 : index
    %c0_30 = arith.constant 0 : index
    %c0_31 = arith.constant 0 : index
    %c0_32 = arith.constant 0 : index
    %19 = vector.load %arg2[%c0_27, %c0_28, %c1_29, %c0_30, %c0_31, %c0_32] : memref<1x1x2x2x90x4xbf16, #tpu.memory_space<vmem>>, vector<1x1x1x1x72x4xbf16>
    %20 = vector.shape_cast %19 : vector<1x1x1x1x72x4xbf16> to vector<72x4xbf16>
    %c3 = arith.constant 3 : index
    %c0_33 = arith.constant 0 : index
    %c0_34 = arith.constant 0 : index
    %21 = vector.load %arg3[%c3, %c0_33, %c0_34] : memref<9x4x4xbf16, #tpu.memory_space<vmem>>, vector<1x4x4xbf16>
    %22 = vector.shape_cast %21 : vector<1x4x4xbf16> to vector<4x4xbf16>
    %cst_35 = arith.constant dense<0.000000e+00> : vector<72x4xf32>
    %23 = tpu.matmul %20, %22, %cst_35 {dimension_numbers = #tpu.dot_dimension_numbers<[1], [0], [0], [1], [0, 0, 1, 1], [], []>} : vector<72x4xbf16>, vector<4x4xbf16>, vector<72x4xf32> -> vector<72x4xf32>
    %24 = arith.addf %18, %23 : vector<72x4xf32>
    %c0_36 = arith.constant 0 : index
    %c0_37 = arith.constant 0 : index
    %c1_38 = arith.constant 1 : index
    %c1_39 = arith.constant 1 : index
    %c0_40 = arith.constant 0 : index
    %c0_41 = arith.constant 0 : index
    %25 = vector.load %arg2[%c0_36, %c0_37, %c1_38, %c1_39, %c0_40, %c0_41] : memref<1x1x2x2x90x4xbf16, #tpu.memory_space<vmem>>, vector<1x1x1x1x72x4xbf16>
    %26 = vector.shape_cast %25 : vector<1x1x1x1x72x4xbf16> to vector<72x4xbf16>
    %c4 = arith.constant 4 : index
    %c0_42 = arith.constant 0 : index
    %c0_43 = arith.constant 0 : index
    %27 = vector.load %arg3[%c4, %c0_42, %c0_43] : memref<9x4x4xbf16, #tpu.memory_space<vmem>>, vector<1x4x4xbf16>
    %28 = vector.shape_cast %27 : vector<1x4x4xbf16> to vector<4x4xbf16>
    %cst_44 = arith.constant dense<0.000000e+00> : vector<72x4xf32>
    %29 = tpu.matmul %26, %28, %cst_44 {dimension_numbers = #tpu.dot_dimension_numbers<[1], [0], [0], [1], [0, 0, 1, 1], [], []>} : vector<72x4xbf16>, vector<4x4xbf16>, vector<72x4xf32> -> vector<72x4xf32>
    %30 = arith.addf %24, %29 : vector<72x4xf32>
    %c0_45 = arith.constant 0 : index
    %c0_46 = arith.constant 0 : index
    %c1_47 = arith.constant 1 : index
    %c0_48 = arith.constant 0 : index
    %c1_49 = arith.constant 1 : index
    %c0_50 = arith.constant 0 : index
    %31 = vector.load %arg2[%c0_45, %c0_46, %c1_47, %c0_48, %c1_49, %c0_50] : memref<1x1x2x2x90x4xbf16, #tpu.memory_space<vmem>>, vector<1x1x1x1x72x4xbf16>
    %32 = vector.shape_cast %31 : vector<1x1x1x1x72x4xbf16> to vector<72x4xbf16>
    %c5 = arith.constant 5 : index
    %c0_51 = arith.constant 0 : index
    %c0_52 = arith.constant 0 : index
    %33 = vector.load %arg3[%c5, %c0_51, %c0_52] : memref<9x4x4xbf16, #tpu.memory_space<vmem>>, vector<1x4x4xbf16>
    %34 = vector.shape_cast %33 : vector<1x4x4xbf16> to vector<4x4xbf16>
    %cst_53 = arith.constant dense<0.000000e+00> : vector<72x4xf32>
    %35 = tpu.matmul %32, %34, %cst_53 {dimension_numbers = #tpu.dot_dimension_numbers<[1], [0], [0], [1], [0, 0, 1, 1], [], []>} : vector<72x4xbf16>, vector<4x4xbf16>, vector<72x4xf32> -> vector<72x4xf32>
    %36 = arith.addf %30, %35 : vector<72x4xf32>
    %c0_54 = arith.constant 0 : index
    %c0_55 = arith.constant 0 : index
    %c0_56 = arith.constant 0 : index
    %c0_57 = arith.constant 0 : index
    %c9 = arith.constant 9 : index
    %c0_58 = arith.constant 0 : index
    %37 = vector.load %arg2[%c0_54, %c0_55, %c0_56, %c0_57, %c9, %c0_58] : memref<1x1x2x2x90x4xbf16, #tpu.memory_space<vmem>>, vector<1x1x1x1x72x4xbf16>
    %38 = vector.shape_cast %37 : vector<1x1x1x1x72x4xbf16> to vector<72x4xbf16>
    %c6 = arith.constant 6 : index
    %c0_59 = arith.constant 0 : index
    %c0_60 = arith.constant 0 : index
    %39 = vector.load %arg3[%c6, %c0_59, %c0_60] : memref<9x4x4xbf16, #tpu.memory_space<vmem>>, vector<1x4x4xbf16>
    %40 = vector.shape_cast %39 : vector<1x4x4xbf16> to vector<4x4xbf16>
    %cst_61 = arith.constant dense<0.000000e+00> : vector<72x4xf32>
    %41 = tpu.matmul %38, %40, %cst_61 {dimension_numbers = #tpu.dot_dimension_numbers<[1], [0], [0], [1], [0, 0, 1, 1], [], []>} : vector<72x4xbf16>, vector<4x4xbf16>, vector<72x4xf32> -> vector<72x4xf32>
    %42 = arith.addf %36, %41 : vector<72x4xf32>
    %c0_62 = arith.constant 0 : index
    %c0_63 = arith.constant 0 : index
    %c0_64 = arith.constant 0 : index
    %c1_65 = arith.constant 1 : index
    %c9_66 = arith.constant 9 : index
    %c0_67 = arith.constant 0 : index
    %43 = vector.load %arg2[%c0_62, %c0_63, %c0_64, %c1_65, %c9_66, %c0_67] : memref<1x1x2x2x90x4xbf16, #tpu.memory_space<vmem>>, vector<1x1x1x1x72x4xbf16>
    %44 = vector.shape_cast %43 : vector<1x1x1x1x72x4xbf16> to vector<72x4xbf16>
    %c7 = arith.constant 7 : index
    %c0_68 = arith.constant 0 : index
    %c0_69 = arith.constant 0 : index
    %45 = vector.load %arg3[%c7, %c0_68, %c0_69] : memref<9x4x4xbf16, #tpu.memory_space<vmem>>, vector<1x4x4xbf16>
    %46 = vector.shape_cast %45 : vector<1x4x4xbf16> to vector<4x4xbf16>
    %cst_70 = arith.constant dense<0.000000e+00> : vector<72x4xf32>
    %47 = tpu.matmul %44, %46, %cst_70 {dimension_numbers = #tpu.dot_dimension_numbers<[1], [0], [0], [1], [0, 0, 1, 1], [], []>} : vector<72x4xbf16>, vector<4x4xbf16>, vector<72x4xf32> -> vector<72x4xf32>
    %48 = arith.addf %42, %47 : vector<72x4xf32>
    %c0_71 = arith.constant 0 : index
    %c0_72 = arith.constant 0 : index
    %c0_73 = arith.constant 0 : index
    %c0_74 = arith.constant 0 : index
    %c10 = arith.constant 10 : index
    %c0_75 = arith.constant 0 : index
    %49 = vector.load %arg2[%c0_71, %c0_72, %c0_73, %c0_74, %c10, %c0_75] : memref<1x1x2x2x90x4xbf16, #tpu.memory_space<vmem>>, vector<1x1x1x1x72x4xbf16>
    %50 = vector.shape_cast %49 : vector<1x1x1x1x72x4xbf16> to vector<72x4xbf16>
    %c8 = arith.constant 8 : index
    %c0_76 = arith.constant 0 : index
    %c0_77 = arith.constant 0 : index
    %51 = vector.load %arg3[%c8, %c0_76, %c0_77] : memref<9x4x4xbf16, #tpu.memory_space<vmem>>, vector<1x4x4xbf16>
    %52 = vector.shape_cast %51 : vector<1x4x4xbf16> to vector<4x4xbf16>
    %cst_78 = arith.constant dense<0.000000e+00> : vector<72x4xf32>
    %53 = tpu.matmul %50, %52, %cst_78 {dimension_numbers = #tpu.dot_dimension_numbers<[1], [0], [0], [1], [0, 0, 1, 1], [], []>} : vector<72x4xbf16>, vector<4x4xbf16>, vector<72x4xf32> -> vector<72x4xf32>
    %54 = arith.addf %48, %53 : vector<72x4xf32>
    %c0_79 = arith.constant 0 : index
    %c0_80 = arith.constant 0 : index
    %55 = vector.load %arg4[%c0_79, %c0_80] : memref<1x4xf32, #tpu.memory_space<vmem>>, vector<1x4xf32>
    %56 = vector.broadcast %55 : vector<1x4xf32> to vector<72x4xf32>
    %57 = arith.addf %54, %56 : vector<72x4xf32>
    %58 = vector.extract_strided_slice %57 {offsets = [0, 0], sizes = [8, 4], strides = [1, 1]} : vector<72x4xf32> to vector<8x4xf32>
    %c0_81 = arith.constant 0 : index
    %c0_82 = arith.constant 0 : index
    %c0_83 = arith.constant 0 : index
    %c0_84 = arith.constant 0 : index
    %c0_85 = arith.constant 0 : index
    %59 = vector.load %arg5[%c0_81, %c0_82, %c0_83, %c0_84, %c0_85] : memref<1x1x8x8x4xf32, #tpu.memory_space<vmem>>, vector<1x1x1x8x4xf32>
    %60 = vector.shape_cast %59 : vector<1x1x1x8x4xf32> to vector<8x4xf32>
    %61 = vector.shape_cast %58 : vector<8x4xf32> to vector<1x1x1x8x4xf32>
    tpu.vector_store %arg5[%c0_81, %c0_82, %c0_83, %c0_84, %c0_85], %61 {strides = array<i32>} : memref<1x1x8x8x4xf32, #tpu.memory_space<vmem>>, vector<1x1x1x8x4xf32>,
    %62 = vector.extract_strided_slice %57 {offsets = [9, 0], sizes = [8, 4], strides = [1, 1]} : vector<72x4xf32> to vector<8x4xf32>
    %c0_86 = arith.constant 0 : index
    %c0_87 = arith.constant 0 : index
    %c1_88 = arith.constant 1 : index
    %c0_89 = arith.constant 0 : index
    %c0_90 = arith.constant 0 : index
    %63 = vector.load %arg5[%c0_86, %c0_87, %c1_88, %c0_89, %c0_90] : memref<1x1x8x8x4xf32, #tpu.memory_space<vmem>>, vector<1x1x1x8x4xf32>
    %64 = vector.shape_cast %63 : vector<1x1x1x8x4xf32> to vector<8x4xf32>
    %65 = vector.shape_cast %62 : vector<8x4xf32> to vector<1x1x1x8x4xf32>
    tpu.vector_store %arg5[%c0_86, %c0_87, %c1_88, %c0_89, %c0_90], %65 {strides = array<i32>} : memref<1x1x8x8x4xf32, #tpu.memory_space<vmem>>, vector<1x1x1x8x4xf32>,
    %66 = vector.extract_strided_slice %57 {offsets = [18, 0], sizes = [8, 4], strides = [1, 1]} : vector<72x4xf32> to vector<8x4xf32>
    %c0_91 = arith.constant 0 : index
    %c0_92 = arith.constant 0 : index
    %c2_93 = arith.constant 2 : index
    %c0_94 = arith.constant 0 : index
    %c0_95 = arith.constant 0 : index
    %67 = vector.load %arg5[%c0_91, %c0_92, %c2_93, %c0_94, %c0_95] : memref<1x1x8x8x4xf32, #tpu.memory_space<vmem>>, vector<1x1x1x8x4xf32>
    %68 = vector.shape_cast %67 : vector<1x1x1x8x4xf32> to vector<8x4xf32>
    %69 = vector.shape_cast %66 : vector<8x4xf32> to vector<1x1x1x8x4xf32>
    tpu.vector_store %arg5[%c0_91, %c0_92, %c2_93, %c0_94, %c0_95], %69 {strides = array<i32>} : memref<1x1x8x8x4xf32, #tpu.memory_space<vmem>>, vector<1x1x1x8x4xf32>,
    %70 = vector.extract_strided_slice %57 {offsets = [27, 0], sizes = [8, 4], strides = [1, 1]} : vector<72x4xf32> to vector<8x4xf32>
    %c0_96 = arith.constant 0 : index
    %c0_97 = arith.constant 0 : index
    %c3_98 = arith.constant 3 : index
    %c0_99 = arith.constant 0 : index
    %c0_100 = arith.constant 0 : index
    %71 = vector.load %arg5[%c0_96, %c0_97, %c3_98, %c0_99, %c0_100] : memref<1x1x8x8x4xf32, #tpu.memory_space<vmem>>, vector<1x1x1x8x4xf32>
    %72 = vector.shape_cast %71 : vector<1x1x1x8x4xf32> to vector<8x4xf32>
    %73 = vector.shape_cast %70 : vector<8x4xf32> to vector<1x1x1x8x4xf32>
    tpu.vector_store %arg5[%c0_96, %c0_97, %c3_98, %c0_99, %c0_100], %73 {strides = array<i32>} : memref<1x1x8x8x4xf32, #tpu.memory_space<vmem>>, vector<1x1x1x8x4xf32>,
    %74 = vector.extract_strided_slice %57 {offsets = [36, 0], sizes = [8, 4], strides = [1, 1]} : vector<72x4xf32> to vector<8x4xf32>
    %c0_101 = arith.constant 0 : index
    %c0_102 = arith.constant 0 : index
    %c4_103 = arith.constant 4 : index
    %c0_104 = arith.constant 0 : index
    %c0_105 = arith.constant 0 : index
    %75 = vector.load %arg5[%c0_101, %c0_102, %c4_103, %c0_104, %c0_105] : memref<1x1x8x8x4xf32, #tpu.memory_space<vmem>>, vector<1x1x1x8x4xf32>
    %76 = vector.shape_cast %75 : vector<1x1x1x8x4xf32> to vector<8x4xf32>
    %77 = vector.shape_cast %74 : vector<8x4xf32> to vector<1x1x1x8x4xf32>
    tpu.vector_store %arg5[%c0_101, %c0_102, %c4_103, %c0_104, %c0_105], %77 {strides = array<i32>} : memref<1x1x8x8x4xf32, #tpu.memory_space<vmem>>, vector<1x1x1x8x4xf32>,
    %78 = vector.extract_strided_slice %57 {offsets = [45, 0], sizes = [8, 4], strides = [1, 1]} : vector<72x4xf32> to vector<8x4xf32>
    %c0_106 = arith.constant 0 : index
    %c0_107 = arith.constant 0 : index
    %c5_108 = arith.constant 5 : index
    %c0_109 = arith.constant 0 : index
    %c0_110 = arith.constant 0 : index
    %79 = vector.load %arg5[%c0_106, %c0_107, %c5_108, %c0_109, %c0_110] : memref<1x1x8x8x4xf32, #tpu.memory_space<vmem>>, vector<1x1x1x8x4xf32>
    %80 = vector.shape_cast %79 : vector<1x1x1x8x4xf32> to vector<8x4xf32>
    %81 = vector.shape_cast %78 : vector<8x4xf32> to vector<1x1x1x8x4xf32>
    tpu.vector_store %arg5[%c0_106, %c0_107, %c5_108, %c0_109, %c0_110], %81 {strides = array<i32>} : memref<1x1x8x8x4xf32, #tpu.memory_space<vmem>>, vector<1x1x1x8x4xf32>,
    %82 = vector.extract_strided_slice %57 {offsets = [54, 0], sizes = [8, 4], strides = [1, 1]} : vector<72x4xf32> to vector<8x4xf32>
    %c0_111 = arith.constant 0 : index
    %c0_112 = arith.constant 0 : index
    %c6_113 = arith.constant 6 : index
    %c0_114 = arith.constant 0 : index
    %c0_115 = arith.constant 0 : index
    %83 = vector.load %arg5[%c0_111, %c0_112, %c6_113, %c0_114, %c0_115] : memref<1x1x8x8x4xf32, #tpu.memory_space<vmem>>, vector<1x1x1x8x4xf32>
    %84 = vector.shape_cast %83 : vector<1x1x1x8x4xf32> to vector<8x4xf32>
    %85 = vector.shape_cast %82 : vector<8x4xf32> to vector<1x1x1x8x4xf32>
    tpu.vector_store %arg5[%c0_111, %c0_112, %c6_113, %c0_114, %c0_115], %85 {strides = array<i32>} : memref<1x1x8x8x4xf32, #tpu.memory_space<vmem>>, vector<1x1x1x8x4xf32>,
    %86 = vector.extract_strided_slice %57 {offsets = [63, 0], sizes = [8, 4], strides = [1, 1]} : vector<72x4xf32> to vector<8x4xf32>
    %c0_116 = arith.constant 0 : index
    %c0_117 = arith.constant 0 : index
    %c7_118 = arith.constant 7 : index
    %c0_119 = arith.constant 0 : index
    %c0_120 = arith.constant 0 : index
    %87 = vector.load %arg5[%c0_116, %c0_117, %c7_118, %c0_119, %c0_120] : memref<1x1x8x8x4xf32, #tpu.memory_space<vmem>>, vector<1x1x1x8x4xf32>
    %88 = vector.shape_cast %87 : vector<1x1x1x8x4xf32> to vector<8x4xf32>
    %89 = vector.shape_cast %86 : vector<8x4xf32> to vector<1x1x1x8x4xf32>
    tpu.vector_store %arg5[%c0_116, %c0_117, %c7_118, %c0_119, %c0_120], %89 {strides = array<i32>} : memref<1x1x8x8x4xf32, #tpu.memory_space<vmem>>, vector<1x1x1x8x4xf32>,
    return
  }
  func.func @transform_0(%arg0: i32, %arg1: i32) -> (i32, i32, i32, i32, i32, i32) {
    %c0_i32 = arith.constant 0 : i32
    %c0_i32_0 = arith.constant 0 : i32
    %c0_i32_1 = arith.constant 0 : i32
    %c0_i32_2 = arith.constant 0 : i32
    %c0_i32_3 = arith.constant 0 : i32
    return %arg0, %arg1, %c0_i32, %c0_i32_0, %c0_i32_1, %c0_i32_2 : i32, i32, i32, i32, i32, i32
  }
  func.func @transform_1(%arg0: i32, %arg1: i32) -> (i32, i32, i32) {
    %c0_i32 = arith.constant 0 : i32
    %c0_i32_0 = arith.constant 0 : i32
    %c0_i32_1 = arith.constant 0 : i32
    %c0_i32_2 = arith.constant 0 : i32
    return %c0_i32, %c0_i32_0, %c0_i32_1 : i32, i32, i32
  }
  func.func @transform_2(%arg0: i32, %arg1: i32) -> (i32, i32) {
    %c0_i32 = arith.constant 0 : i32
    %c0_i32_0 = arith.constant 0 : i32
    %c0_i32_1 = arith.constant 0 : i32
    return %c0_i32, %c0_i32_0 : i32, i32
  }
  func.func @transform_3(%arg0: i32, %arg1: i32) -> (i32, i32, i32, i32, i32) {
    %c0_i32 = arith.constant 0 : i32
    %c0_i32_0 = arith.constant 0 : i32
    %c0_i32_1 = arith.constant 0 : i32
    %c0_i32_2 = arith.constant 0 : i32
    return %arg0, %arg1, %c0_i32, %c0_i32_0, %c0_i32_1 : i32, i32, i32, i32, i32
  }
}

</mosaic_0001>

<llo_original>
// kernel: tpu_custom_call.1
$region0: #{tpu_custom_call.1}
  #allocation0 [shape = 'u32[]', space=smem, size = 0x4, offset = 0x4, fixed_abs, tag = 'smem constant byte address 0x4 - core index']
  #allocation1 [shape = 'u32[72,128]{1,0:T(1,128)}', space=vmem, size = 0x9000, scoped, tag = 'internal scratch']
  %s0 = inlined_call_operand.vmem [shape: bf16[2,1,2,2,90,4], index: 0, kind: input, shape index: {}]
  %s1 = inlined_call_operand.vmem [shape: bf16[9,4,4], index: 1, kind: input, shape index: {}]
  %s2 = inlined_call_operand.vmem [shape: f32[1,4], index: 2, kind: input, shape index: {}]
  %s3 = inlined_call_operand.vmem [shape: f32[2,1,8,8,4], index: 3, kind: output, shape index: {}]
  %s4 = sld [smem:[#allocation0]]
  $region45: #{tpu_custom_call.1} parent=0
    _
  %s6 = ssub.s32 1, %s4
  %s7 = scalar_select 0, %s6, %s4
  loop: start=0, step=1, limit=4
  $region2: #{tpu_custom_call.1} parent=0 // loop_pre_header
    _
  $region3: #{tpu_custom_call.1} parent=0 // loop_header
    %s9 = sphi 0, %s13
    %p10 = scmp.ge.s32.totalorder %s9, 4
    %s16 = sphi 0, %s28
    %s17 = sphi 0, %s24
    %s18 = sphi 0, %s16
    %s19 = sphi 0, %s17
    %s20 = sphi 0, %s18
    %s21 = sphi 0, %s19
    %s33 = sphi 0, %s35
    %s36 = sphi 0, %s33
    %s37 = sphi 0, %s36
    %s53 = sphi 0, %s37
    %s57 = sphi 0, %s57
    %s59 = sphi 0, %s57
    %s60 = sphi 0, %s59
    %s74 = sphi 0, %s60
    %s78 = sphi 0, %s78
    %s80 = sphi 0, %s78
    %s81 = sphi 0, %s80
    %s95 = sphi 0, %s81
    %s103 = sphi 0, %s105
    %s106 = sphi 0, %s103
    %s107 = sphi 0, %s106
    %s123 = sphi 0, %s107
  $region4: #{tpu_custom_call.1} parent=0 // loop_header_branch
    %12 = sbr.rel (%p10) target = $region8
  $region5: #{tpu_custom_call.1} parent=0 // loop_body
    %s14 = ssub.s32 %s9, 1
    %s15 = ssub.s32 %s9, 2
    %s22 = sadd.s32 1, %s17
    %p23 = scmp.ge.s32.totalorder %s22, 1
    %s24 = scalar_select %p23, 0, %s22
    %s25 = sadd.s32 1, %s16
    %s26 = scalar_select %p23, %s25, %s16
    %p27 = scmp.ge.s32.totalorder %s26, 2
    %s28 = scalar_select %p27, 0, %s26
    %s29 = ssub.s32 %s16, %s28
    %s30 = ssub.s32 %s17, %s24
    %s31 = sor.u32 %s29, %s30
    %p32 = scmp.eq.s32.totalorder %s31, 0
    %s34 = sadd.s32 %s33, 1
    %s35 = scalar_select %p32, %s33, %s34
    %p38 = pneg %p32
    %p39 = scmp.eq.s32.totalorder %s9, 1
    %p40 = por %p38, %p39
    %p41 = scmp.ne.s32.totalorder %s33, %s36
    %p42 = scmp.eq.s32.totalorder %s9, 0
    %p43 = por %p41, %p42
    %p44 = scmp.ne.s32.totalorder %s33, %s36
    %p45 = scmp.eq.s32.totalorder %s14, 1
    %p46 = por %p44, %p45
    %p47 = scmp.ne.s32.totalorder %s36, %s37
    %p48 = scmp.eq.s32.totalorder %s14, 0
    %p49 = por %p47, %p48
    %p50 = scmp.ne.s32.totalorder %s36, %s37
    %p51 = scmp.eq.s32.totalorder %s15, 1
    %p52 = por %p50, %p51
    %p54 = scmp.ne.s32.totalorder %s37, %s53
    %p55 = scmp.eq.s32.totalorder %s15, 0
    %p56 = por %p54, %p55
    %s58 = sadd.s32 %s57, 1
    %p61 = scmp.eq.s32.totalorder %s9, 1
    %p62 = scmp.ne.s32.totalorder %s57, %s59
    %p63 = scmp.eq.s32.totalorder %s9, 0
    %p64 = por %p62, %p63
    %p65 = scmp.ne.s32.totalorder %s57, %s59
    %p66 = scmp.eq.s32.totalorder %s14, 1
    %p67 = por %p65, %p66
    %p68 = scmp.ne.s32.totalorder %s59, %s60
    %p69 = scmp.eq.s32.totalorder %s14, 0
    %p70 = por %p68, %p69
    %p71 = scmp.ne.s32.totalorder %s59, %s60
    %p72 = scmp.eq.s32.totalorder %s15, 1
    %p73 = por %p71, %p72
    %p75 = scmp.ne.s32.totalorder %s60, %s74
    %p76 = scmp.eq.s32.totalorder %s15, 0
    %p77 = por %p75, %p76
    %s79 = sadd.s32 %s78, 1
    %p82 = scmp.eq.s32.totalorder %s9, 1
    %p83 = scmp.ne.s32.totalorder %s78, %s80
    %p84 = scmp.eq.s32.totalorder %s9, 0
    %p85 = por %p83, %p84
    %p86 = scmp.ne.s32.totalorder %s78, %s80
    %p87 = scmp.eq.s32.totalorder %s14, 1
    %p88 = por %p86, %p87
    %p89 = scmp.ne.s32.totalorder %s80, %s81
    %p90 = scmp.eq.s32.totalorder %s14, 0
    %p91 = por %p89, %p90
    %p92 = scmp.ne.s32.totalorder %s80, %s81
    %p93 = scmp.eq.s32.totalorder %s15, 1
    %p94 = por %p92, %p93
    %p96 = scmp.ne.s32.totalorder %s81, %s95
    %p97 = scmp.eq.s32.totalorder %s15, 0
    %p98 = por %p96, %p97
    %s99 = ssub.s32 %s16, %s28
    %s100 = ssub.s32 %s17, %s24
    %s101 = sor.u32 %s99, %s100
    %p102 = scmp.eq.s32.totalorder %s101, 0
    %s104 = sadd.s32 %s103, 1
    %s105 = scalar_select %p102, %s103, %s104
    %p108 = pneg %p102
    %p109 = scmp.eq.s32.totalorder %s9, 1
    %p110 = por %p108, %p109
    %p111 = scmp.ne.s32.totalorder %s103, %s106
    %p112 = scmp.eq.s32.totalorder %s9, 0
    %p113 = por %p111, %p112
    %p114 = scmp.ne.s32.totalorder %s103, %s106
    %p115 = scmp.eq.s32.totalorder %s14, 1
    %p116 = por %p114, %p115
    %p117 = scmp.ne.s32.totalorder %s106, %s107
    %p118 = scmp.eq.s32.totalorder %s14, 0
    %p119 = por %p117, %p118
    %p120 = scmp.ne.s32.totalorder %s106, %s107
    %p121 = scmp.eq.s32.totalorder %s15, 1
    %p122 = por %p120, %p121
    %p124 = scmp.ne.s32.totalorder %s107, %s123
    %p125 = scmp.eq.s32.totalorder %s15, 0
    %p126 = por %p124, %p125
    %p127 = scmp.le.s32.totalorder 1, %s9
    %p128 = scmp.lt.s32.totalorder %s9, 3
    %p129 = pnand %p127, %p128
    %p130 = pneg %p129
    // Predicated region
    $region9: #{tpu_custom_call.1} parent=5 // pred_check
      _
    $region10: #{tpu_custom_call.1} parent=5 // pred_check_branch
      %132 = sbr.rel (%p129) target = $region12
    $region11: #{tpu_custom_call.1} parent=5 // pred_region
      %s133 = ssub.s32 %s9, 1
      // Predicated region
      $region13: #{tpu_custom_call.1} parent=11 // pred_check
        %p134 = pneg %p70
      $region14: #{tpu_custom_call.1} parent=11 // pred_check_branch
        %136 = sbr.rel (%p134) target = $region16
      $region15: #{tpu_custom_call.1} parent=11 // pred_region
        _
      $region16: #{tpu_custom_call.1} parent=11 // pred_fallthru
        _
      // Predicated region
      $region17: #{tpu_custom_call.1} parent=11 // pred_check
        %p137 = pneg %p91
      $region18: #{tpu_custom_call.1} parent=11 // pred_check_branch
        %139 = sbr.rel (%p137) target = $region20
      $region19: #{tpu_custom_call.1} parent=11 // pred_region
        _
      $region20: #{tpu_custom_call.1} parent=11 // pred_fallthru
        _
    $region12: #{tpu_custom_call.1} parent=5 // pred_fallthru
      _
    %p140 = scmp.lt.s32.totalorder %s9, 2
    // Predicated region
    $region21: #{tpu_custom_call.1} parent=5 // pred_check
      %p141 = pneg %p140
    $region22: #{tpu_custom_call.1} parent=5 // pred_check_branch
      %143 = sbr.rel (%p141) target = $region24
    $region23: #{tpu_custom_call.1} parent=5 // pred_region
      // Predicated region
      $region25: #{tpu_custom_call.1} parent=23 // pred_check
        %p144 = pneg %p43
      $region26: #{tpu_custom_call.1} parent=23 // pred_check_branch
        %146 = sbr.rel (%p144) target = $region28
      $region27: #{tpu_custom_call.1} parent=23 // pred_region
        %p147 = scmp.lt.s32.totalorder %s16, 1
        %s148 = scalar_select %p147, %s16, 1
        %p149 = scmp.lt.s32.totalorder %s17, 0
        %s150 = scalar_select %p149, %s17, 0
        %s151 = smul.addr %s150, 48
        %s152 = smul.addr %s148, 48
        %s153 = sadd.s32 %s151, %s152
        %s154 = smul.addr %s153, 4
        %s155 = scalar_lea.vmem %s0, %s154
      $region28: #{tpu_custom_call.1} parent=23 // pred_fallthru
        _
    $region24: #{tpu_custom_call.1} parent=5 // pred_fallthru
      _
    %p156 = scmp.le.s32.totalorder 1, %s9
    %p157 = scmp.lt.s32.totalorder %s9, 3
    %p158 = pnand %p156, %p157
    %p159 = pneg %p158
    // Predicated region
    $region29: #{tpu_custom_call.1} parent=5 // pred_check
      _
    $region30: #{tpu_custom_call.1} parent=5 // pred_check_branch
      %161 = sbr.rel (%p158) target = $region32
    $region31: #{tpu_custom_call.1} parent=5 // pred_region
      %s162 = ssub.s32 %s9, 1
      %p163 = scmp.lt.s32.totalorder %s18, 1
      %s164 = scalar_select %p163, %s18, 1
      %p165 = scmp.lt.s32.totalorder %s19, 0
      %s166 = scalar_select %p165, %s19, 0
      %s167 = smul.addr %s166, 48
      %s168 = smul.addr %s164, 48
      %s169 = sadd.s32 %s167, %s168
      %s170 = smul.addr %s169, 4
      %s171 = scalar_lea.vmem %s0, %s170
      %p172 = pneg %p49
      %p173 = pneg %p46
      %p174 = pneg %p70
      %p175 = pneg %p67
      %p176 = pneg %p91
      %p177 = pneg %p88
      %p178 = pneg %p119
      %p179 = pneg %p116
      %p180 = scmp.lt.s32.totalorder %s18, 1
      %s181 = scalar_select %p180, %s18, 1
      %p182 = scmp.lt.s32.totalorder %s19, 0
      %s183 = scalar_select %p182, %s19, 0
      %s184 = smul.addr %s183, 8
      %s185 = smul.addr %s181, 8
      %s186 = sadd.s32 %s184, %s185
      %s187 = smul.addr %s186, 8
      %s188 = scalar_lea.vmem %s3, %s187
      %p189 = scmp.lt.s32.totalorder %s18, 1
      %s190 = scalar_select %p189, %s18, 1
      %p191 = scmp.lt.s32.totalorder %s19, 0
      %s192 = scalar_select %p191, %s19, 0
      %s193 = smul.addr %s192, 48
      %s194 = smul.addr %s190, 48
      %s195 = sadd.s32 %s193, %s194
      %s196 = smul.addr %s195, 4
      %s197 = scalar_lea.vmem %s0, %s196
      %p198 = scmp.lt.s32.totalorder %s18, 1
      %s199 = scalar_select %p198, %s18, 1
      %p200 = scmp.lt.s32.totalorder %s19, 0
      %s201 = scalar_select %p200, %s19, 0
      %s202 = smul.addr %s201, 8
      %s203 = smul.addr %s199, 8
      %s204 = sadd.s32 %s202, %s203
      %s205 = smul.addr %s204, 8
      %s206 = scalar_lea.vmem %s3, %s205
      %v208 = vld [vmem:[%s197] sm:$0xf]
      %v209 = vld [vmem:[%s197 + $0x4] sm:$0xf]
      %v210 = vld [vmem:[%s197 + $0x8] sm:$0xf]
      %v211 = vld [vmem:[%s197 + $0xc] sm:$0xf]
      %v212 = vld [vmem:[%s197 + $0x10] sm:$0xf]
      %v213 = vld [vmem:[%s197 + $0x14] sm:$0xf]
      %v214 = vld [vmem:[%s197 + $0x18] sm:$0xf]
      %v215 = vld [vmem:[%s197 + $0x1c] sm:$0xf]
      %v216 = vld [vmem:[%s197 + $0x20] sm:$0xf]
      %v217 = vld [vmem:[%s1] sm:$0x3]
      %s218 = scalar_lea.vmem %s197, 48
      %v219 = vld [vmem:[%s218] sm:$0xf]
      %v220 = vld [vmem:[%s218 + $0x4] sm:$0xf]
      %v221 = vld [vmem:[%s218 + $0x8] sm:$0xf]
      %v222 = vld [vmem:[%s218 + $0xc] sm:$0xf]
      %v223 = vld [vmem:[%s218 + $0x10] sm:$0xf]
      %v224 = vld [vmem:[%s218 + $0x14] sm:$0xf]
      %v225 = vld [vmem:[%s218 + $0x18] sm:$0xf]
      %v226 = vld [vmem:[%s218 + $0x1c] sm:$0xf]
      %v227 = vld [vmem:[%s218 + $0x20] sm:$0xf]
      %s228 = scalar_lea.vmem %s1, 2
      %v229 = vld [vmem:[%s228] sm:$0x3]
      %v239 = vunpack.c.l.b16 %v219
      %v240 = vunpack.c.l.b16 %v220
      %v241 = vunpack.c.l.b16 %v221
      %v242 = vunpack.c.l.b16 %v222
      %v243 = vunpack.c.l.b16 %v223
      %v244 = vunpack.c.l.b16 %v224
      %v245 = vunpack.c.l.b16 %v225
      %v246 = vunpack.c.l.b16 %v226
      %v247 = vunpack.c.l.b16 %v227
      %v248 = vpack.c.b16 %v240, %v239
      %v249 = vpack.c.b16 %v242, %v241
      %v250 = vpack.c.b16 %v244, %v243
      %v251 = vpack.c.b16 %v246, %v245
      %v252 = vpack.c.b16 %v247, %v247
      %vm253 = vcmask 31744
      %v255 = vsel %vm253, %v248, 0
      %v258 = vsel %vm253, %v249, 0
      %v261 = vsel %vm253, %v250, 0
      %v264 = vsel %vm253, %v251, 0
      %v267 = vsel %vm253, %v252, 0
      %vm269 = vcmask 1041408
      %v271 = vsel %vm269, %v229, 0
      %273 = vmatpush.bf16.msra.mxu0 0
      %274 = vmatpush.bf16.msra.mxu0 0
      %275 = vmatpush.bf16.msra.mxu0 0
      %276 = vmatpush.bf16.msra.mxu0 0
      %277 = vmatpush.bf16.msra.mxu0 0
      %278 = vmatpush.bf16.msra.mxu0 0
      %279 = vmatpush.bf16.msra.mxu0 0
      %280 = vmatpush.bf16.msra.mxu0 %v271
      %281 = vmatmul.bf16.gmra.mxu0 %v255
      %v282 = vpop.f32.mrf.mxu0
      %v283 = vadd.f32 0.0, %v282
      %v284 = vpop.f32.mrf.mxu0
      %v285 = vadd.f32 0.0, %v284
      %286 = vmatmul.bf16.gmra.mxu0 %v258
      %v287 = vpop.f32.mrf.mxu0
      %v288 = vadd.f32 0.0, %v287
      %v289 = vpop.f32.mrf.mxu0
      %v290 = vadd.f32 0.0, %v289
      %291 = vmatmul.bf16.gmra.mxu0 %v261
      %v292 = vpop.f32.mrf.mxu0
      %v293 = vadd.f32 0.0, %v292
      %v294 = vpop.f32.mrf.mxu0
      %v295 = vadd.f32 0.0, %v294
      %296 = vmatmul.bf16.gmra.mxu0 %v264
      %v297 = vpop.f32.mrf.mxu0
      %v298 = vadd.f32 0.0, %v297
      %v299 = vpop.f32.mrf.mxu0
      %v300 = vadd.f32 0.0, %v299
      %301 = vmatmul.bf16.gmra.mxu0 %v267
      %v302 = vpop.f32.mrf.mxu0
      %v303 = vadd.f32 0.0, %v302
      %v304 = vpop.f32.mrf.mxu0
      %305 = vdwg.mxu0
      %v315 = vunpack.c.l.b16 %v208
      %v316 = vunpack.c.l.b16 %v209
      %v317 = vunpack.c.l.b16 %v210
      %v318 = vunpack.c.l.b16 %v211
      %v319 = vunpack.c.l.b16 %v212
      %v320 = vunpack.c.l.b16 %v213
      %v321 = vunpack.c.l.b16 %v214
      %v322 = vunpack.c.l.b16 %v215
      %v323 = vunpack.c.l.b16 %v216
      %v324 = vpack.c.b16 %v316, %v315
      %v325 = vpack.c.b16 %v318, %v317
      %v326 = vpack.c.b16 %v320, %v319
      %v327 = vpack.c.b16 %v322, %v321
      %v328 = vpack.c.b16 %v323, %v323
      %v330 = vsel %vm253, %v324, 0
      %v333 = vsel %vm253, %v325, 0
      %v336 = vsel %vm253, %v326, 0
      %v339 = vsel %vm253, %v327, 0
      %v342 = vsel %vm253, %v328, 0
      %v345 = vsel %vm269, %v217, 0
      %347 = vmatpush.bf16.msra.mxu0 0
      %348 = vmatpush.bf16.msra.mxu0 0
      %349 = vmatpush.bf16.msra.mxu0 0
      %350 = vmatpush.bf16.msra.mxu0 0
      %351 = vmatpush.bf16.msra.mxu0 0
      %352 = vmatpush.bf16.msra.mxu0 0
      %353 = vmatpush.bf16.msra.mxu0 0
      %354 = vmatpush.bf16.msra.mxu0 %v345
      %355 = vmatmul.bf16.gmra.mxu0 %v330
      %v356 = vpop.f32.mrf.mxu0
      %v357 = vadd.f32 %v283, %v356
      %v358 = vpop.f32.mrf.mxu0
      %v359 = vadd.f32 %v285, %v358
      %360 = vmatmul.bf16.gmra.mxu0 %v333
      %v361 = vpop.f32.mrf.mxu0
      %v362 = vadd.f32 %v288, %v361
      %v363 = vpop.f32.mrf.mxu0
      %v364 = vadd.f32 %v290, %v363
      %365 = vmatmul.bf16.gmra.mxu0 %v336
      %v366 = vpop.f32.mrf.mxu0
      %v367 = vadd.f32 %v293, %v366
      %v368 = vpop.f32.mrf.mxu0
      %v369 = vadd.f32 %v295, %v368
      %370 = vmatmul.bf16.gmra.mxu0 %v339
      %v371 = vpop.f32.mrf.mxu0
      %v372 = vadd.f32 %v298, %v371
      %v373 = vpop.f32.mrf.mxu0
      %v374 = vadd.f32 %v300, %v373
      %375 = vmatmul.bf16.gmra.mxu0 %v342
      %v376 = vpop.f32.mrf.mxu0
      %v377 = vadd.f32 %v303, %v376
      %v378 = vpop.f32.mrf.mxu0
      %379 = vdwg.mxu0
      %v380 = vld [vmem:[%s197] sm:$0xf]
      %v381 = vld [vmem:[%s197 + $0x4] sm:$0xf]
      %v382 = vld [vmem:[%s197 + $0x8] sm:$0xf]
      %v383 = vld [vmem:[%s197 + $0xc] sm:$0xf]
      %v384 = vld [vmem:[%s197 + $0x10] sm:$0xf]
      %v385 = vld [vmem:[%s197 + $0x14] sm:$0xf]
      %v386 = vld [vmem:[%s197 + $0x18] sm:$0xf]
      %v387 = vld [vmem:[%s197 + $0x1c] sm:$0xf]
      %v388 = vld [vmem:[%s197 + $0x20] sm:$0xf]
      %v389 = vld [vmem:[%s197 + $0x24] sm:$0x1]
      %s390 = scalar_lea.vmem %s1, 4
      %v391 = vld [vmem:[%s390] sm:$0x3]
      %v402 = vunpack.c.l.b16 %v380
      %v403 = vunpack.c.l.b16 %v381
      %v404 = vunpack.c.l.b16 %v382
      %v405 = vunpack.c.l.b16 %v383
      %v406 = vunpack.c.l.b16 %v384
      %v407 = vunpack.c.l.b16 %v385
      %v408 = vunpack.c.l.b16 %v386
      %v409 = vunpack.c.l.b16 %v387
      %v410 = vunpack.c.l.b16 %v388
      %v411 = vunpack.c.l.b16 %v389
      %v412 = vpack.c.b16 %v403, %v402
      %v413 = vpack.c.b16 %v405, %v404
      %v414 = vpack.c.b16 %v407, %v406
      %v415 = vpack.c.b16 %v409, %v408
      %v416 = vpack.c.b16 %v411, %v410
      %vm417 = vsmask.f32 7424
      %v419 = vshrl.u32 %v412, 16
      %v421 = vshll.u32 %v412, 16
      %v423 = vrot.slane %v421, 1
      %v424 = vor.u32 %v419, %v423
      %v426 = vshll.u32 %v413, 16
      %v428 = vrot.slane %v426, 1
      %v429 = vsel %vm417, %v424, %v428
      %v430 = vshrl.u32 %v413, 16
      %v432 = vor.u32 %v430, %v428
      %v434 = vshll.u32 %v414, 16
      %v436 = vrot.slane %v434, 1
      %v437 = vsel %vm417, %v432, %v436
      %v438 = vshrl.u32 %v414, 16
      %v440 = vor.u32 %v438, %v436
      %v442 = vshll.u32 %v415, 16
      %v444 = vrot.slane %v442, 1
      %v445 = vsel %vm417, %v440, %v444
      %v446 = vshrl.u32 %v415, 16
      %v448 = vor.u32 %v446, %v444
      %v450 = vshll.u32 %v416, 16
      %v452 = vrot.slane %v450, 1
      %v453 = vsel %vm417, %v448, %v452
      %v454 = vshrl.u32 %v416, 16
      %v456 = vor.u32 %v454, %v452
      %v458 = vsel %vm253, %v429, 0
      %v461 = vsel %vm253, %v437, 0
      %v464 = vsel %vm253, %v445, 0
      %v467 = vsel %vm253, %v453, 0
      %v470 = vsel %vm253, %v456, 0
      %v473 = vsel %vm269, %v391, 0
      %475 = vmatpush.bf16.msra.mxu0 0
      %476 = vmatpush.bf16.msra.mxu0 0
      %477 = vmatpush.bf16.msra.mxu0 0
      %478 = vmatpush.bf16.msra.mxu0 0
      %479 = vmatpush.bf16.msra.mxu0 0
      %480 = vmatpush.bf16.msra.mxu0 0
      %481 = vmatpush.bf16.msra.mxu0 0
      %482 = vmatpush.bf16.msra.mxu0 %v473
      %483 = vmatmul.bf16.gmra.mxu0 %v458
      %v484 = vpop.f32.mrf.mxu0
      %v485 = vadd.f32 0.0, %v484
      %v486 = vpop.f32.mrf.mxu0
      %v487 = vadd.f32 0.0, %v486
      %488 = vmatmul.bf16.gmra.mxu0 %v461
      %v489 = vpop.f32.mrf.mxu0
      %v490 = vadd.f32 0.0, %v489
      %v491 = vpop.f32.mrf.mxu0
      %v492 = vadd.f32 0.0, %v491
      %493 = vmatmul.bf16.gmra.mxu0 %v464
      %v494 = vpop.f32.mrf.mxu0
      %v495 = vadd.f32 0.0, %v494
      %v496 = vpop.f32.mrf.mxu0
      %v497 = vadd.f32 0.0, %v496
      %498 = vmatmul.bf16.gmra.mxu0 %v467
      %v499 = vpop.f32.mrf.mxu0
      %v500 = vadd.f32 0.0, %v499
      %v501 = vpop.f32.mrf.mxu0
      %v502 = vadd.f32 0.0, %v501
      %503 = vmatmul.bf16.gmra.mxu0 %v470
      %v504 = vpop.f32.mrf.mxu0
      %v505 = vadd.f32 0.0, %v504
      %v506 = vpop.f32.mrf.mxu0
      %507 = vdwg.mxu0
      %v508 = vadd.f32 %v357, %v485
      %v509 = vadd.f32 %v359, %v487
      %v510 = vadd.f32 %v362, %v490
      %v511 = vadd.f32 %v364, %v492
      %v512 = vadd.f32 %v367, %v495
      %v513 = vadd.f32 %v369, %v497
      %v514 = vadd.f32 %v372, %v500
      %v515 = vadd.f32 %v374, %v502
      %v516 = vadd.f32 %v377, %v505
      %s517 = scalar_lea.vmem %s197, 96
      %v518 = vld [vmem:[%s517] sm:$0xf]
      %v519 = vld [vmem:[%s517 + $0x4] sm:$0xf]
      %v520 = vld [vmem:[%s517 + $0x8] sm:$0xf]
      %v521 = vld [vmem:[%s517 + $0xc] sm:$0xf]
      %v522 = vld [vmem:[%s517 + $0x10] sm:$0xf]
      %v523 = vld [vmem:[%s517 + $0x14] sm:$0xf]
      %v524 = vld [vmem:[%s517 + $0x18] sm:$0xf]
      %v525 = vld [vmem:[%s517 + $0x1c] sm:$0xf]
      %v526 = vld [vmem:[%s517 + $0x20] sm:$0xf]
      %s527 = scalar_lea.vmem %s1, 6
      %v528 = vld [vmem:[%s527] sm:$0x3]
      %v538 = vunpack.c.l.b16 %v518
      %v539 = vunpack.c.l.b16 %v519
      %v540 = vunpack.c.l.b16 %v520
      %v541 = vunpack.c.l.b16 %v521
      %v542 = vunpack.c.l.b16 %v522
      %v543 = vunpack.c.l.b16 %v523
      %v544 = vunpack.c.l.b16 %v524
      %v545 = vunpack.c.l.b16 %v525
      %v546 = vunpack.c.l.b16 %v526
      %v547 = vpack.c.b16 %v539, %v538
      %v548 = vpack.c.b16 %v541, %v540
      %v549 = vpack.c.b16 %v543, %v542
      %v550 = vpack.c.b16 %v545, %v544
      %v551 = vpack.c.b16 %v546, %v546
      %v553 = vsel %vm253, %v547, 0
      %v556 = vsel %vm253, %v548, 0
      %v559 = vsel %vm253, %v549, 0
      %v562 = vsel %vm253, %v550, 0
      %v565 = vsel %vm253, %v551, 0
      %v568 = vsel %vm269, %v528, 0
      %570 = vmatpush.bf16.msra.mxu0 0
      %571 = vmatpush.bf16.msra.mxu0 0
      %572 = vmatpush.bf16.msra.mxu0 0
      %573 = vmatpush.bf16.msra.mxu0 0
      %574 = vmatpush.bf16.msra.mxu0 0
      %575 = vmatpush.bf16.msra.mxu0 0
      %576 = vmatpush.bf16.msra.mxu0 0
      %577 = vmatpush.bf16.msra.mxu0 %v568
      %578 = vmatmul.bf16.gmra.mxu0 %v553
      %v579 = vpop.f32.mrf.mxu0
      %v580 = vadd.f32 0.0, %v579
      %v581 = vpop.f32.mrf.mxu0
      %v582 = vadd.f32 0.0, %v581
      %583 = vmatmul.bf16.gmra.mxu0 %v556
      %v584 = vpop.f32.mrf.mxu0
      %v585 = vadd.f32 0.0, %v584
      %v586 = vpop.f32.mrf.mxu0
      %v587 = vadd.f32 0.0, %v586
      %588 = vmatmul.bf16.gmra.mxu0 %v559
      %v589 = vpop.f32.mrf.mxu0
      %v590 = vadd.f32 0.0, %v589
      %v591 = vpop.f32.mrf.mxu0
      %v592 = vadd.f32 0.0, %v591
      %593 = vmatmul.bf16.gmra.mxu0 %v562
      %v594 = vpop.f32.mrf.mxu0
      %v595 = vadd.f32 0.0, %v594
      %v596 = vpop.f32.mrf.mxu0
      %v597 = vadd.f32 0.0, %v596
      %598 = vmatmul.bf16.gmra.mxu0 %v565
      %v599 = vpop.f32.mrf.mxu0
      %v600 = vadd.f32 0.0, %v599
      %v601 = vpop.f32.mrf.mxu0
      %602 = vdwg.mxu0
      %v603 = vadd.f32 %v508, %v580
      %v604 = vadd.f32 %v509, %v582
      %v605 = vadd.f32 %v510, %v585
      %v606 = vadd.f32 %v511, %v587
      %v607 = vadd.f32 %v512, %v590
      %v608 = vadd.f32 %v513, %v592
      %v609 = vadd.f32 %v514, %v595
      %v610 = vadd.f32 %v515, %v597
      %v611 = vadd.f32 %v516, %v600
      %s612 = scalar_lea.vmem %s197, 144
      %v613 = vld [vmem:[%s612] sm:$0xf]
      %v614 = vld [vmem:[%s612 + $0x4] sm:$0xf]
      %v615 = vld [vmem:[%s612 + $0x8] sm:$0xf]
      %v616 = vld [vmem:[%s612 + $0xc] sm:$0xf]
      %v617 = vld [vmem:[%s612 + $0x10] sm:$0xf]
      %v618 = vld [vmem:[%s612 + $0x14] sm:$0xf]
      %v619 = vld [vmem:[%s612 + $0x18] sm:$0xf]
      %v620 = vld [vmem:[%s612 + $0x1c] sm:$0xf]
      %v621 = vld [vmem:[%s612 + $0x20] sm:$0xf]
      %s622 = scalar_lea.vmem %s1, 8
      %v623 = vld [vmem:[%s622] sm:$0x3]
      %v633 = vunpack.c.l.b16 %v613
      %v634 = vunpack.c.l.b16 %v614
      %v635 = vunpack.c.l.b16 %v615
      %v636 = vunpack.c.l.b16 %v616
      %v637 = vunpack.c.l.b16 %v617
      %v638 = vunpack.c.l.b16 %v618
      %v639 = vunpack.c.l.b16 %v619
      %v640 = vunpack.c.l.b16 %v620
      %v641 = vunpack.c.l.b16 %v621
      %v642 = vpack.c.b16 %v634, %v633
      %v643 = vpack.c.b16 %v636, %v635
      %v644 = vpack.c.b16 %v638, %v637
      %v645 = vpack.c.b16 %v640, %v639
      %v646 = vpack.c.b16 %v641, %v641
      %v648 = vsel %vm253, %v642, 0
      %v651 = vsel %vm253, %v643, 0
      %v654 = vsel %vm253, %v644, 0
      %v657 = vsel %vm253, %v645, 0
      %v660 = vsel %vm253, %v646, 0
      %v663 = vsel %vm269, %v623, 0
      %665 = vmatpush.bf16.msra.mxu0 0
      %666 = vmatpush.bf16.msra.mxu0 0
      %667 = vmatpush.bf16.msra.mxu0 0
      %668 = vmatpush.bf16.msra.mxu0 0
      %669 = vmatpush.bf16.msra.mxu0 0
      %670 = vmatpush.bf16.msra.mxu0 0
      %671 = vmatpush.bf16.msra.mxu0 0
      %672 = vmatpush.bf16.msra.mxu0 %v663
      %673 = vmatmul.bf16.gmra.mxu0 %v648
      %v674 = vpop.f32.mrf.mxu0
      %v675 = vadd.f32 0.0, %v674
      %v676 = vpop.f32.mrf.mxu0
      %v677 = vadd.f32 0.0, %v676
      %678 = vmatmul.bf16.gmra.mxu0 %v651
      %v679 = vpop.f32.mrf.mxu0
      %v680 = vadd.f32 0.0, %v679
      %v681 = vpop.f32.mrf.mxu0
      %v682 = vadd.f32 0.0, %v681
      %683 = vmatmul.bf16.gmra.mxu0 %v654
      %v684 = vpop.f32.mrf.mxu0
      %v685 = vadd.f32 0.0, %v684
      %v686 = vpop.f32.mrf.mxu0
      %v687 = vadd.f32 0.0, %v686
      %688 = vmatmul.bf16.gmra.mxu0 %v657
      %v689 = vpop.f32.mrf.mxu0
      %v690 = vadd.f32 0.0, %v689
      %v691 = vpop.f32.mrf.mxu0
      %v692 = vadd.f32 0.0, %v691
      %693 = vmatmul.bf16.gmra.mxu0 %v660
      %v694 = vpop.f32.mrf.mxu0
      %v695 = vadd.f32 0.0, %v694
      %v696 = vpop.f32.mrf.mxu0
      %697 = vdwg.mxu0
      %v698 = vadd.f32 %v603, %v675
      %v699 = vadd.f32 %v604, %v677
      %v700 = vadd.f32 %v605, %v680
      %v701 = vadd.f32 %v606, %v682
      %v702 = vadd.f32 %v607, %v685
      %v703 = vadd.f32 %v608, %v687
      %v704 = vadd.f32 %v609, %v690
      %v705 = vadd.f32 %v610, %v692
      %v706 = vadd.f32 %v611, %v695
      %v707 = vld [vmem:[%s517] sm:$0xf]
      %v708 = vld [vmem:[%s517 + $0x4] sm:$0xf]
      %v709 = vld [vmem:[%s517 + $0x8] sm:$0xf]
      %v710 = vld [vmem:[%s517 + $0xc] sm:$0xf]
      %v711 = vld [vmem:[%s517 + $0x10] sm:$0xf]
      %v712 = vld [vmem:[%s517 + $0x14] sm:$0xf]
      %v713 = vld [vmem:[%s517 + $0x18] sm:$0xf]
      %v714 = vld [vmem:[%s517 + $0x1c] sm:$0xf]
      %v715 = vld [vmem:[%s517 + $0x20] sm:$0xf]
      %v716 = vld [vmem:[%s517 + $0x24] sm:$0x1]
      %s717 = scalar_lea.vmem %s1, 10
      %v718 = vld [vmem:[%s717] sm:$0x3]
      %v729 = vunpack.c.l.b16 %v707
      %v730 = vunpack.c.l.b16 %v708
      %v731 = vunpack.c.l.b16 %v709
      %v732 = vunpack.c.l.b16 %v710
      %v733 = vunpack.c.l.b16 %v711
      %v734 = vunpack.c.l.b16 %v712
      %v735 = vunpack.c.l.b16 %v713
      %v736 = vunpack.c.l.b16 %v714
      %v737 = vunpack.c.l.b16 %v715
      %v738 = vunpack.c.l.b16 %v716
      %v739 = vpack.c.b16 %v730, %v729
      %v740 = vpack.c.b16 %v732, %v731
      %v741 = vpack.c.b16 %v734, %v733
      %v742 = vpack.c.b16 %v736, %v735
      %v743 = vpack.c.b16 %v738, %v737
      %v745 = vshrl.u32 %v739, 16
      %v747 = vshll.u32 %v739, 16
      %v749 = vrot.slane %v747, 1
      %v750 = vor.u32 %v745, %v749
      %v752 = vshll.u32 %v740, 16
      %v754 = vrot.slane %v752, 1
      %v755 = vsel %vm417, %v750, %v754
      %v756 = vshrl.u32 %v740, 16
      %v758 = vor.u32 %v756, %v754
      %v760 = vshll.u32 %v741, 16
      %v762 = vrot.slane %v760, 1
      %v763 = vsel %vm417, %v758, %v762
      %v764 = vshrl.u32 %v741, 16
      %v766 = vor.u32 %v764, %v762
      %v768 = vshll.u32 %v742, 16
      %v770 = vrot.slane %v768, 1
      %v771 = vsel %vm417, %v766, %v770
      %v772 = vshrl.u32 %v742, 16
      %v774 = vor.u32 %v772, %v770
      %v776 = vshll.u32 %v743, 16
      %v778 = vrot.slane %v776, 1
      %v779 = vsel %vm417, %v774, %v778
      %v780 = vshrl.u32 %v743, 16
      %v782 = vor.u32 %v780, %v778
      %v784 = vsel %vm253, %v755, 0
      %v787 = vsel %vm253, %v763, 0
      %v790 = vsel %vm253, %v771, 0
      %v793 = vsel %vm253, %v779, 0
      %v796 = vsel %vm253, %v782, 0
      %v799 = vsel %vm269, %v718, 0
      %801 = vmatpush.bf16.msra.mxu0 0
      %802 = vmatpush.bf16.msra.mxu0 0
      %803 = vmatpush.bf16.msra.mxu0 0
      %804 = vmatpush.bf16.msra.mxu0 0
      %805 = vmatpush.bf16.msra.mxu0 0
      %806 = vmatpush.bf16.msra.mxu0 0
      %807 = vmatpush.bf16.msra.mxu0 0
      %808 = vmatpush.bf16.msra.mxu0 %v799
      %809 = vmatmul.bf16.gmra.mxu0 %v784
      %v810 = vpop.f32.mrf.mxu0
      %v811 = vadd.f32 0.0, %v810
      %v812 = vpop.f32.mrf.mxu0
      %v813 = vadd.f32 0.0, %v812
      %814 = vmatmul.bf16.gmra.mxu0 %v787
      %v815 = vpop.f32.mrf.mxu0
      %v816 = vadd.f32 0.0, %v815
      %v817 = vpop.f32.mrf.mxu0
      %v818 = vadd.f32 0.0, %v817
      %819 = vmatmul.bf16.gmra.mxu0 %v790
      %v820 = vpop.f32.mrf.mxu0
      %v821 = vadd.f32 0.0, %v820
      %v822 = vpop.f32.mrf.mxu0
      %v823 = vadd.f32 0.0, %v822
      %824 = vmatmul.bf16.gmra.mxu0 %v793
      %v825 = vpop.f32.mrf.mxu0
      %v826 = vadd.f32 0.0, %v825
      %v827 = vpop.f32.mrf.mxu0
      %v828 = vadd.f32 0.0, %v827
      %829 = vmatmul.bf16.gmra.mxu0 %v796
      %v830 = vpop.f32.mrf.mxu0
      %v831 = vadd.f32 0.0, %v830
      %v832 = vpop.f32.mrf.mxu0
      %833 = vdwg.mxu0
      %v834 = vadd.f32 %v698, %v811
      %v835 = vadd.f32 %v699, %v813
      %v836 = vadd.f32 %v700, %v816
      %v837 = vadd.f32 %v701, %v818
      %v838 = vadd.f32 %v702, %v821
      %v839 = vadd.f32 %v703, %v823
      %v840 = vadd.f32 %v704, %v826
      %v841 = vadd.f32 %v705, %v828
      %v842 = vadd.f32 %v706, %v831
      %v843 = vld [vmem:[%s197 + $0x4] sm:$0xf]
      %v844 = vld [vmem:[%s197 + $0x8] sm:$0xf]
      %v845 = vld [vmem:[%s197 + $0xc] sm:$0xf]
      %v846 = vld [vmem:[%s197 + $0x10] sm:$0xf]
      %v847 = vld [vmem:[%s197 + $0x14] sm:$0xf]
      %v848 = vld [vmem:[%s197 + $0x18] sm:$0xf]
      %v849 = vld [vmem:[%s197 + $0x1c] sm:$0xf]
      %v850 = vld [vmem:[%s197 + $0x20] sm:$0xf]
      %v851 = vld [vmem:[%s197 + $0x24] sm:$0xf]
      %v852 = vld [vmem:[%s197 + $0x28] sm:$0x1]
      %s853 = scalar_lea.vmem %s1, 12
      %v854 = vld [vmem:[%s853] sm:$0x3]
      %v865 = vunpack.c.l.b16 %v843
      %v866 = vunpack.c.l.b16 %v844
      %v867 = vunpack.c.l.b16 %v845
      %v868 = vunpack.c.l.b16 %v846
      %v869 = vunpack.c.l.b16 %v847
      %v870 = vunpack.c.l.b16 %v848
      %v871 = vunpack.c.l.b16 %v849
      %v872 = vunpack.c.l.b16 %v850
      %v873 = vunpack.c.l.b16 %v851
      %v874 = vunpack.c.l.b16 %v852
      %v875 = vpack.c.b16 %v866, %v865
      %v876 = vpack.c.b16 %v868, %v867
      %v877 = vpack.c.b16 %v870, %v869
      %v878 = vpack.c.b16 %v872, %v871
      %v879 = vpack.c.b16 %v874, %v873
      %v881 = vshrl.u32 %v875, 16
      %v883 = vshll.u32 %v875, 16
      %v885 = vrot.slane %v883, 1
      %v886 = vor.u32 %v881, %v885
      %v888 = vshll.u32 %v876, 16
      %v890 = vrot.slane %v888, 1
      %v891 = vsel %vm417, %v886, %v890
      %v892 = vshrl.u32 %v876, 16
      %v894 = vor.u32 %v892, %v890
      %v896 = vshll.u32 %v877, 16
      %v898 = vrot.slane %v896, 1
      %v899 = vsel %vm417, %v894, %v898
      %v900 = vshrl.u32 %v877, 16
      %v902 = vor.u32 %v900, %v898
      %v904 = vshll.u32 %v878, 16
      %v906 = vrot.slane %v904, 1
      %v907 = vsel %vm417, %v902, %v906
      %v908 = vshrl.u32 %v878, 16
      %v910 = vor.u32 %v908, %v906
      %v912 = vshll.u32 %v879, 16
      %v914 = vrot.slane %v912, 1
      %v915 = vsel %vm417, %v910, %v914
      %v916 = vshrl.u32 %v879, 16
      %v918 = vor.u32 %v916, %v914
      %v920 = vsel %vm253, %v891, 0
      %v923 = vsel %vm253, %v899, 0
      %v926 = vsel %vm253, %v907, 0
      %v929 = vsel %vm253, %v915, 0
      %v932 = vsel %vm253, %v918, 0
      %v935 = vsel %vm269, %v854, 0
      %937 = vmatpush.bf16.msra.mxu0 0
      %938 = vmatpush.bf16.msra.mxu0 0
      %939 = vmatpush.bf16.msra.mxu0 0
      %940 = vmatpush.bf16.msra.mxu0 0
      %941 = vmatpush.bf16.msra.mxu0 0
      %942 = vmatpush.bf16.msra.mxu0 0
      %943 = vmatpush.bf16.msra.mxu0 0
      %944 = vmatpush.bf16.msra.mxu0 %v935
      %945 = vmatmul.bf16.gmra.mxu0 %v920
      %v946 = vpop.f32.mrf.mxu0
      %v947 = vadd.f32 0.0, %v946
      %v948 = vpop.f32.mrf.mxu0
      %v949 = vadd.f32 0.0, %v948
      %950 = vmatmul.bf16.gmra.mxu0 %v923
      %v951 = vpop.f32.mrf.mxu0
      %v952 = vadd.f32 0.0, %v951
      %v953 = vpop.f32.mrf.mxu0
      %v954 = vadd.f32 0.0, %v953
      %955 = vmatmul.bf16.gmra.mxu0 %v926
      %v956 = vpop.f32.mrf.mxu0
      %v957 = vadd.f32 0.0, %v956
      %v958 = vpop.f32.mrf.mxu0
      %v959 = vadd.f32 0.0, %v958
      %960 = vmatmul.bf16.gmra.mxu0 %v929
      %v961 = vpop.f32.mrf.mxu0
      %v962 = vadd.f32 0.0, %v961
      %v963 = vpop.f32.mrf.mxu0
      %v964 = vadd.f32 0.0, %v963
      %965 = vmatmul.bf16.gmra.mxu0 %v932
      %v966 = vpop.f32.mrf.mxu0
      %v967 = vadd.f32 0.0, %v966
      %v968 = vpop.f32.mrf.mxu0
      %969 = vdwg.mxu0
      %v970 = vadd.f32 %v834, %v947
      %v971 = vadd.f32 %v835, %v949
      %v972 = vadd.f32 %v836, %v952
      %v973 = vadd.f32 %v837, %v954
      %v974 = vadd.f32 %v838, %v957
      %v975 = vadd.f32 %v839, %v959
      %v976 = vadd.f32 %v840, %v962
      %v977 = vadd.f32 %v841, %v964
      %v978 = vadd.f32 %v842, %v967
      %v979 = vld [vmem:[%s218 + $0x4] sm:$0xf]
      %v980 = vld [vmem:[%s218 + $0x8] sm:$0xf]
      %v981 = vld [vmem:[%s218 + $0xc] sm:$0xf]
      %v982 = vld [vmem:[%s218 + $0x10] sm:$0xf]
      %v983 = vld [vmem:[%s218 + $0x14] sm:$0xf]
      %v984 = vld [vmem:[%s218 + $0x18] sm:$0xf]
      %v985 = vld [vmem:[%s218 + $0x1c] sm:$0xf]
      %v986 = vld [vmem:[%s218 + $0x20] sm:$0xf]
      %v987 = vld [vmem:[%s218 + $0x24] sm:$0xf]
      %v988 = vld [vmem:[%s218 + $0x28] sm:$0x1]
      %s989 = scalar_lea.vmem %s1, 14
      %v990 = vld [vmem:[%s989] sm:$0x3]
      %v1001 = vunpack.c.l.b16 %v979
      %v1002 = vunpack.c.l.b16 %v980
      %v1003 = vunpack.c.l.b16 %v981
      %v1004 = vunpack.c.l.b16 %v982
      %v1005 = vunpack.c.l.b16 %v983
      %v1006 = vunpack.c.l.b16 %v984
      %v1007 = vunpack.c.l.b16 %v985
      %v1008 = vunpack.c.l.b16 %v986
      %v1009 = vunpack.c.l.b16 %v987
      %v1010 = vunpack.c.l.b16 %v988
      %v1011 = vpack.c.b16 %v1002, %v1001
      %v1012 = vpack.c.b16 %v1004, %v1003
      %v1013 = vpack.c.b16 %v1006, %v1005
      %v1014 = vpack.c.b16 %v1008, %v1007
      %v1015 = vpack.c.b16 %v1010, %v1009
      %v1017 = vshrl.u32 %v1011, 16
      %v1019 = vshll.u32 %v1011, 16
      %v1021 = vrot.slane %v1019, 1
      %v1022 = vor.u32 %v1017, %v1021
      %v1024 = vshll.u32 %v1012, 16
      %v1026 = vrot.slane %v1024, 1
      %v1027 = vsel %vm417, %v1022, %v1026
      %v1028 = vshrl.u32 %v1012, 16
      %v1030 = vor.u32 %v1028, %v1026
      %v1032 = vshll.u32 %v1013, 16
      %v1034 = vrot.slane %v1032, 1
      %v1035 = vsel %vm417, %v1030, %v1034
      %v1036 = vshrl.u32 %v1013, 16
      %v1038 = vor.u32 %v1036, %v1034
      %v1040 = vshll.u32 %v1014, 16
      %v1042 = vrot.slane %v1040, 1
      %v1043 = vsel %vm417, %v1038, %v1042
      %v1044 = vshrl.u32 %v1014, 16
      %v1046 = vor.u32 %v1044, %v1042
      %v1048 = vshll.u32 %v1015, 16
      %v1050 = vrot.slane %v1048, 1
      %v1051 = vsel %vm417, %v1046, %v1050
      %v1052 = vshrl.u32 %v1015, 16
      %v1054 = vor.u32 %v1052, %v1050
      %v1056 = vsel %vm253, %v1027, 0
      %v1059 = vsel %vm253, %v1035, 0
      %v1062 = vsel %vm253, %v1043, 0
      %v1065 = vsel %vm253, %v1051, 0
      %v1068 = vsel %vm253, %v1054, 0
      %v1071 = vsel %vm269, %v990, 0
      %1073 = vmatpush.bf16.msra.mxu0 0
      %1074 = vmatpush.bf16.msra.mxu0 0
      %1075 = vmatpush.bf16.msra.mxu0 0
      %1076 = vmatpush.bf16.msra.mxu0 0
      %1077 = vmatpush.bf16.msra.mxu0 0
      %1078 = vmatpush.bf16.msra.mxu0 0
      %1079 = vmatpush.bf16.msra.mxu0 0
      %1080 = vmatpush.bf16.msra.mxu0 %v1071
      %1081 = vmatmul.bf16.gmra.mxu0 %v1056
      %v1082 = vpop.f32.mrf.mxu0
      %v1083 = vadd.f32 0.0, %v1082
      %v1084 = vpop.f32.mrf.mxu0
      %v1085 = vadd.f32 0.0, %v1084
      %1086 = vmatmul.bf16.gmra.mxu0 %v1059
      %v1087 = vpop.f32.mrf.mxu0
      %v1088 = vadd.f32 0.0, %v1087
      %v1089 = vpop.f32.mrf.mxu0
      %v1090 = vadd.f32 0.0, %v1089
      %1091 = vmatmul.bf16.gmra.mxu0 %v1062
      %v1092 = vpop.f32.mrf.mxu0
      %v1093 = vadd.f32 0.0, %v1092
      %v1094 = vpop.f32.mrf.mxu0
      %v1095 = vadd.f32 0.0, %v1094
      %1096 = vmatmul.bf16.gmra.mxu0 %v1065
      %v1097 = vpop.f32.mrf.mxu0
      %v1098 = vadd.f32 0.0, %v1097
      %v1099 = vpop.f32.mrf.mxu0
      %v1100 = vadd.f32 0.0, %v1099
      %1101 = vmatmul.bf16.gmra.mxu0 %v1068
      %v1102 = vpop.f32.mrf.mxu0
      %v1103 = vadd.f32 0.0, %v1102
      %v1104 = vpop.f32.mrf.mxu0
      %1105 = vdwg.mxu0
      %v1106 = vadd.f32 %v970, %v1083
      %v1107 = vadd.f32 %v971, %v1085
      %v1108 = vadd.f32 %v972, %v1088
      %v1109 = vadd.f32 %v973, %v1090
      %v1110 = vadd.f32 %v974, %v1093
      %v1111 = vadd.f32 %v975, %v1095
      %v1112 = vadd.f32 %v976, %v1098
      %v1113 = vadd.f32 %v977, %v1100
      %v1114 = vadd.f32 %v978, %v1103
      %v1115 = vld [vmem:[%s197 + $0x4] sm:$0xe]
      %s1116 = scalar_lea.vmem %s1, 16
      %v1117 = vld [vmem:[%s1116] sm:$0x3]
      %v1119 = vunpack.c.l.b16 %v1115
      %v1120 = vpack.c.b16 %v866, %v1119
      %vm1121 = vcmask 1046528
      %v1122 = vrot.slane %v1120, 1
      %v1123 = vrot.slane %v876, 1
      %v1124 = vsel %vm1121, %v1122, %v1123
      %v1125 = vrot.slane %v877, 1
      %v1126 = vsel %vm1121, %v1123, %v1125
      %v1127 = vrot.slane %v878, 1
      %v1128 = vsel %vm1121, %v1125, %v1127
      %v1129 = vrot.slane %v879, 1
      %v1130 = vsel %vm1121, %v1127, %v1129
      %v1132 = vsel %vm253, %v1124, 0
      %v1135 = vsel %vm253, %v1126, 0
      %v1138 = vsel %vm253, %v1128, 0
      %v1141 = vsel %vm253, %v1130, 0
      %v1144 = vsel %vm253, %v1129, 0
      %v1147 = vsel %vm269, %v1117, 0
      %1149 = vmatpush.bf16.msra.mxu0 0
      %1150 = vmatpush.bf16.msra.mxu0 0
      %1151 = vmatpush.bf16.msra.mxu0 0
      %1152 = vmatpush.bf16.msra.mxu0 0
      %1153 = vmatpush.bf16.msra.mxu0 0
      %1154 = vmatpush.bf16.msra.mxu0 0
      %1155 = vmatpush.bf16.msra.mxu0 0
      %1156 = vmatpush.bf16.msra.mxu0 %v1147
      %1157 = vmatmul.bf16.gmra.mxu0 %v1132
      %v1158 = vpop.f32.mrf.mxu0
      %v1159 = vadd.f32 0.0, %v1158
      %v1160 = vpop.f32.mrf.mxu0
      %v1161 = vadd.f32 0.0, %v1160
      %1162 = vmatmul.bf16.gmra.mxu0 %v1135
      %v1163 = vpop.f32.mrf.mxu0
      %v1164 = vadd.f32 0.0, %v1163
      %v1165 = vpop.f32.mrf.mxu0
      %v1166 = vadd.f32 0.0, %v1165
      %1167 = vmatmul.bf16.gmra.mxu0 %v1138
      %v1168 = vpop.f32.mrf.mxu0
      %v1169 = vadd.f32 0.0, %v1168
      %v1170 = vpop.f32.mrf.mxu0
      %v1171 = vadd.f32 0.0, %v1170
      %1172 = vmatmul.bf16.gmra.mxu0 %v1141
      %v1173 = vpop.f32.mrf.mxu0
      %v1174 = vadd.f32 0.0, %v1173
      %v1175 = vpop.f32.mrf.mxu0
      %v1176 = vadd.f32 0.0, %v1175
      %1177 = vmatmul.bf16.gmra.mxu0 %v1144
      %v1178 = vpop.f32.mrf.mxu0
      %v1179 = vadd.f32 0.0, %v1178
      %v1180 = vpop.f32.mrf.mxu0
      %1181 = vdwg.mxu0
      %v1182 = vadd.f32 %v1106, %v1159
      %v1183 = vadd.f32 %v1107, %v1161
      %v1184 = vadd.f32 %v1108, %v1164
      %v1185 = vadd.f32 %v1109, %v1166
      %v1186 = vadd.f32 %v1110, %v1169
      %v1187 = vadd.f32 %v1111, %v1171
      %v1188 = vadd.f32 %v1112, %v1174
      %v1189 = vadd.f32 %v1113, %v1176
      %v1190 = vadd.f32 %v1114, %v1179
      %v1191 = vld [vmem:[%s2] sm:$0x1]
      %v1193 = vperm.slane %v1191, 0
      %v1195 = vadd.f32 %v1182, %v1193
      %v1196 = vadd.f32 %v1183, %v1193
      %v1197 = vadd.f32 %v1184, %v1193
      %v1198 = vadd.f32 %v1185, %v1193
      %v1199 = vadd.f32 %v1186, %v1193
      %v1200 = vadd.f32 %v1187, %v1193
      %v1201 = vadd.f32 %v1188, %v1193
      %v1202 = vadd.f32 %v1189, %v1193
      %v1203 = vadd.f32 %v1190, %v1193
      %1204 = vst.msk [vmem:[%s206] sm:$0xff] %vm253, %v1195
      %s1205 = scalar_lea.vmem %s206, 8
      %vm1206 = vcmask 31745
      %1207 = vst.msk [vmem:[%s1205 - $0x1] sm:$0xfe] %vm1206, %v1196
      %vm1208 = vcmask 24576
      %1209 = vst.msk [vmem:[%s1205 + $0x7] sm:$0x1] %vm1208, %v1197
      %s1210 = scalar_lea.vmem %s206, 16
      %vm1211 = vcmask 31746
      %1212 = vst.msk [vmem:[%s1210 - $0x2] sm:$0xfc] %vm1211, %v1197
      %vm1213 = vcmask 25600
      %1214 = vst.msk [vmem:[%s1210 + $0x6] sm:$0x3] %vm1213, %v1198
      %s1215 = scalar_lea.vmem %s206, 24
      %vm1216 = vcmask 31747
      %1217 = vst.msk [vmem:[%s1215 - $0x3] sm:$0xf8] %vm1216, %v1198
      %vm1218 = vcmask 26624
      %1219 = vst.msk [vmem:[%s1215 + $0x5] sm:$0x7] %vm1218, %v1199
      %s1220 = scalar_lea.vmem %s206, 32
      %vm1221 = vcmask 31748
      %1222 = vst.msk [vmem:[%s1220 - $0x4] sm:$0xf0] %vm1221, %v1199
      %vm1223 = vcmask 27648
      %1224 = vst.msk [vmem:[%s1220 + $0x4] sm:$0xf] %vm1223, %v1200
      %s1225 = scalar_lea.vmem %s206, 40
      %vm1226 = vcmask 31749
      %1227 = vst.msk [vmem:[%s1225 - $0x5] sm:$0xe0] %vm1226, %v1200
      %vm1228 = vcmask 28672
      %1229 = vst.msk [vmem:[%s1225 + $0x3] sm:$0x1f] %vm1228, %v1201
      %s1230 = scalar_lea.vmem %s206, 48
      %vm1231 = vcmask 31750
      %1232 = vst.msk [vmem:[%s1230 - $0x6] sm:$0xc0] %vm1231, %v1201
      %vm1233 = vcmask 29696
      %1234 = vst.msk [vmem:[%s1230 + $0x2] sm:$0x3f] %vm1233, %v1202
      %s1235 = scalar_lea.vmem %s206, 56
      %vm1236 = vcmask 31751
      %1237 = vst.msk [vmem:[%s1235 - $0x7] sm:$0x80] %vm1236, %v1202
      %vm1238 = vcmask 30720
      %1239 = vst.msk [vmem:[%s1235 + $0x1] sm:$0x7f] %vm1238, %v1203
      %p1240 = scmp.lt.s32.totalorder %s18, 1
      %s1241 = scalar_select %p1240, %s18, 1
      %p1242 = scmp.lt.s32.totalorder %s19, 0
      %s1243 = scalar_select %p1242, %s19, 0
      %s1244 = smul.addr %s1243, 8
      %s1245 = smul.addr %s1241, 8
      %s1246 = sadd.s32 %s1244, %s1245
      %s1247 = smul.addr %s1246, 8
      %s1248 = scalar_lea.vmem %s3, %s1247
      // Predicated region
      $region33: #{tpu_custom_call.1} parent=31 // pred_check
        %p1249 = pneg %p116
      $region34: #{tpu_custom_call.1} parent=31 // pred_check_branch
        %1251 = sbr.rel (%p1249) target = $region36
      $region35: #{tpu_custom_call.1} parent=31 // pred_region
        _
      $region36: #{tpu_custom_call.1} parent=31 // pred_fallthru
        _
    $region32: #{tpu_custom_call.1} parent=5 // pred_fallthru
      _
    %p1252 = scmp.le.s32.totalorder 2, %s9
    // Predicated region
    $region37: #{tpu_custom_call.1} parent=5 // pred_check
      %p1253 = pneg %p1252
    $region38: #{tpu_custom_call.1} parent=5 // pred_check_branch
      %1255 = sbr.rel (%p1253) target = $region40
    $region39: #{tpu_custom_call.1} parent=5 // pred_region
      %s1256 = ssub.s32 %s9, 2
      // Predicated region
      $region41: #{tpu_custom_call.1} parent=39 // pred_check
        %p1257 = pneg %p122
      $region42: #{tpu_custom_call.1} parent=39 // pred_check_branch
        %1259 = sbr.rel (%p1257) target = $region44
      $region43: #{tpu_custom_call.1} parent=39 // pred_region
        %p1260 = scmp.lt.s32.totalorder %s20, 1
        %s1261 = scalar_select %p1260, %s20, 1
        %p1262 = scmp.lt.s32.totalorder %s21, 0
        %s1263 = scalar_select %p1262, %s21, 0
        %s1264 = smul.addr %s1263, 8
        %s1265 = smul.addr %s1261, 8
        %s1266 = sadd.s32 %s1264, %s1265
        %s1267 = smul.addr %s1266, 8
        %s1268 = scalar_lea.vmem %s3, %s1267
      $region44: #{tpu_custom_call.1} parent=39 // pred_fallthru
        _
    $region40: #{tpu_custom_call.1} parent=5 // pred_fallthru
      _
  $region6: #{tpu_custom_call.1} parent=0 // loop_footer
    %s13 = sadd.s32 1, %s9
  $region7: #{tpu_custom_call.1} parent=0 // loop_footer_branch
    %8 = sbr.rel target = $region3
  $region8: #{tpu_custom_call.1} parent=0 // loop_exit
    _

</llo_original>
